<compile_context>
chip_gen: v7x
topology: tpu7x:2x2x1
jax: 0.10.0
libtpu: 0.0.40
codegen_flags: <defaults>
</compile_context>

<pallas_src>
import functools

import jax
import jax.numpy as jnp
from jax.experimental import pallas as pl
from jax.experimental.pallas import tpu as pltpu


def _round_up(n, m):
    return (n + m - 1) // m * m


def _choose_tiles(B, V, itemsize, sub, block_bytes):
    """Pick (TB, TV) so one x block is ~block_bytes and layout constraints hold."""
    row_bytes = V * itemsize
    if row_bytes * sub <= block_bytes:
        tv = V  # full vocab per step (common case)
    else:
        # Huge vocab: chunk V in multiples of 128 lanes.
        tv = max(128, (block_bytes // (sub * itemsize)) // 128 * 128)
    chunk_row_bytes = tv * itemsize
    tb_budget = max(sub, (block_bytes // chunk_row_bytes) // sub * sub)
    tb = min(_round_up(B, sub), tb_budget)

    # Megacore: keep >=2 (ideally >=4) batch tiles when each still moves >=1 MiB.
    min_step_bytes = 1 << 20
    total_bytes = B * chunk_row_bytes
    if total_bytes >= 4 * min_step_bytes:
        tb = min(tb, max(sub, _round_up(pl.cdiv(B, 4), sub)))
    elif total_bytes >= 2 * min_step_bytes:
        tb = min(tb, max(sub, _round_up(pl.cdiv(B, 2), sub)))
    return tb, tv


def _segment_classifier_kernel(x_ref, w_ref, b_ref, o_ref, acc_ref, *,
                               v_total, tv, mask_v):
    # x_ref: [TB, TV] (VMEM), w_ref: [1, TV] (VMEM), b_ref: [1, 1] (SMEM scalar),
    # o_ref: [TB, 1], acc_ref: [TB, 1] f32 scratch (resident across the k axis).
    k = pl.program_id(1)

    @pl.when(k == 0)
    def _init():
        acc_ref[...] = jnp.zeros_like(acc_ref)

    x = x_ref[...].astype(jnp.float32)
    w = w_ref[...].astype(jnp.float32)          # [1, TV] broadcasts over TB rows
    prod = x * w                                # VPU
    if mask_v:
        # Last V chunk extends past V: zero out-of-range lanes before reducing.
        col = k * tv + jax.lax.broadcasted_iota(jnp.int32, prod.shape, 1)
        prod = jnp.where(col < v_total, prod, 0.0)
    acc_ref[...] += jnp.sum(prod, axis=-1, keepdims=True)   # XLU lane reduce, f32

    @pl.when(k == pl.num_programs(1) - 1)
    def _finalize():
        logits = acc_ref[...] + b_ref[0, 0]
        o_ref[...] = jax.nn.sigmoid(logits).astype(o_ref.dtype)


def segment_classifier(x, weight, bias, *, storage_dtype=None,
                       block_bytes=4 << 20):
    """x: [B, V]; weight: [1, V] (torch Linear layout); bias: [1] -> [B, 1]."""
    B, V = x.shape
    out_dtype = x.dtype
    if storage_dtype is not None:
        # Optional HBM-traffic win (bf16 storage, f32 accumulation in-kernel).
        x = x.astype(storage_dtype)
    w_row = weight.reshape(1, V).astype(x.dtype)            # lane-major weight row
    b_smem = jnp.asarray(bias, jnp.float32).reshape(1, 1)   # SMEM scalar

    itemsize = jnp.dtype(x.dtype).itemsize
    sub = {4: 8, 2: 16, 1: 32}.get(itemsize, 8)             # sublane packing
    tb, tv = _choose_tiles(B, V, itemsize, sub, block_bytes)
    nb = pl.cdiv(B, tb)
    nk = pl.cdiv(V, tv)
    mask_v = (tv != V) and (V % tv != 0)

    cost = pl.CostEstimate(
        flops=2 * B * V,
        transcendentals=B,
        bytes_accessed=B * V * itemsize + V * itemsize
        + B * jnp.dtype(out_dtype).itemsize,
    )

    kernel = functools.partial(_segment_classifier_kernel,
                               v_total=V, tv=tv, mask_v=mask_v)

    out = pl.pallas_call(
        kernel,
        out_shape=jax.ShapeDtypeStruct((B, 1), out_dtype),
        grid_spec=pltpu.PrefetchScalarGridSpec(
            num_scalar_prefetch=0,
            grid=(nb, nk),
            in_specs=[
                pl.BlockSpec((tb, tv), lambda i, k: (i, k)),            # x tile
                pl.BlockSpec((1, tv), lambda i, k: (0, k)),             # weight chunk
                pl.BlockSpec(memory_space=pltpu.MemorySpace.SMEM),      # bias scalar
            ],
            out_specs=pl.BlockSpec((tb, 1), lambda i, k: (i, 0)),
            scratch_shapes=[pltpu.VMEM((tb, 1), jnp.float32)],
        ),
        compiler_params=pltpu.CompilerParams(
            dimension_semantics=("parallel", "arbitrary"),
        ),
        cost_estimate=cost,
    )(x, w_row, b_smem)
    return out


def _reference(x, weight, bias):
    return jax.nn.sigmoid(x @ weight.T + bias)


if __name__ == "__main__":
    key = jax.random.PRNGKey(0)

    # Case 1: shapes consistent with the module (batch=8, vocab_size=128).
    B, V = 8, 128
    kx, kw, kb, k2 = jax.random.split(key, 4)
    x = jax.random.normal(kx, (B, V), dtype=jnp.float32)
    bound = 1.0 / jnp.sqrt(jnp.float32(V))
    weight = jax.random.uniform(kw, (1, V), jnp.float32, minval=-bound, maxval=bound)
    bias = jax.random.uniform(kb, (1,), jnp.float32, minval=-bound, maxval=bound)

    out = jax.block_until_ready(segment_classifier(x, weight, bias))
    ref = _reference(x, weight, bias)
    assert out.shape == (B, 1)
    assert jnp.allclose(out, ref, atol=1e-5, rtol=1e-5)

    # Case 2: exercise partial batch block, V-chunking + lane masking by forcing
    # a tiny block-byte budget (B=13 not a tile multiple, V=400 not 128*k).
    B2, V2 = 13, 400
    k2a, k2b, k2c = jax.random.split(k2, 3)
    x2 = jax.random.normal(k2a, (B2, V2), dtype=jnp.float32)
    bound2 = 1.0 / jnp.sqrt(jnp.float32(V2))
    w2 = jax.random.uniform(k2b, (1, V2), jnp.float32, minval=-bound2, maxval=bound2)
    b2 = jax.random.uniform(k2c, (1,), jnp.float32, minval=-bound2, maxval=bound2)

    out2 = jax.block_until_ready(
        segment_classifier(x2, w2, b2, block_bytes=4096))
    ref2 = _reference(x2, w2, b2)
    assert out2.shape == (B2, 1)
    assert jnp.allclose(out2, ref2, atol=1e-5, rtol=1e-5)

    print("KERNEL_OK")
</pallas_src>

<mosaic_0001>
module attributes {stable_mosaic.version = 11 : i64} {
  func.func @_segment_classifier_kernel(%arg0: i32, %arg1: i32, %arg2: memref<8x128xf32, #tpu.memory_space<vmem>>, %arg3: memref<1x128xf32, #tpu.memory_space<vmem>>, %arg4: memref<1x1xf32, #tpu.memory_space<smem>>, %arg5: memref<8x1xf32, #tpu.memory_space<vmem>>, %arg6: memref<8x1xf32, #tpu.memory_space<vmem>>) attributes {dimension_semantics = [#tpu.dimension_semantics<parallel>, #tpu.dimension_semantics<arbitrary>], iteration_bounds = array<i64: 1, 1>, scalar_prefetch = 0 : i64, scratch_operands = 1 : i64, tpu.core_type = #tpu.core_type<tc>, window_params = [{transform_indices = @transform_0, window_bounds = array<i64: 8, 128>}, {transform_indices = @transform_1, window_bounds = array<i64: 1, 128>}, {transform_indices = @transform_2, window_bounds = array<i64: 1, 1>}, {transform_indices = @transform_3, window_bounds = array<i64: 8, 1>}]} {
    %c0_i32 = arith.constant 0 : i32
    %0 = arith.cmpi eq, %arg1, %c0_i32 : i32
    %1 = arith.extui %0 : i1 to i32
    %c0_i32_0 = arith.constant 0 : i32
    %2 = arith.cmpi ne, %1, %c0_i32_0 : i32
    scf.if %2 {
      %cst_10 = arith.constant 0.000000e+00 : f32
      %15 = vector.broadcast %cst_10 : f32 to vector<8x1xf32>
      %c0_11 = arith.constant 0 : index
      %c0_12 = arith.constant 0 : index
      %16 = vector.load %arg6[%c0_11, %c0_12] : memref<8x1xf32, #tpu.memory_space<vmem>>, vector<8x1xf32>
      tpu.vector_store %arg6[%c0_11, %c0_12], %15 {strides = array<i32>} : memref<8x1xf32, #tpu.memory_space<vmem>>, vector<8x1xf32>,
    } else {
    }
    %c0 = arith.constant 0 : index
    %c0_1 = arith.constant 0 : index
    %3 = vector.load %arg2[%c0, %c0_1] : memref<8x128xf32, #tpu.memory_space<vmem>>, vector<8x128xf32>
    %c0_2 = arith.constant 0 : index
    %c0_3 = arith.constant 0 : index
    %4 = vector.load %arg3[%c0_2, %c0_3] : memref<1x128xf32, #tpu.memory_space<vmem>>, vector<1x128xf32>
    %5 = vector.broadcast %4 : vector<1x128xf32> to vector<8x128xf32>
    %6 = arith.mulf %3, %5 : vector<8x128xf32>
    %c0_4 = arith.constant 0 : index
    %c0_5 = arith.constant 0 : index
    %7 = vector.load %arg6[%c0_4, %c0_5] : memref<8x1xf32, #tpu.memory_space<vmem>>, vector<8x1xf32>
    %cst = arith.constant dense<0.000000e+00> : vector<8xf32>
    %8 = vector.multi_reduction <add>, %6, %cst [1] : vector<8x128xf32> to vector<8xf32>
    %9 = vector.shape_cast %8 : vector<8xf32> to vector<8x1xf32>
    %10 = arith.addf %7, %9 : vector<8x1xf32>
    %c0_6 = arith.constant 0 : index
    %c0_7 = arith.constant 0 : index
    %11 = vector.load %arg6[%c0_6, %c0_7] : memref<8x1xf32, #tpu.memory_space<vmem>>, vector<8x1xf32>
    tpu.vector_store %arg6[%c0_6, %c0_7], %10 {strides = array<i32>} : memref<8x1xf32, #tpu.memory_space<vmem>>, vector<8x1xf32>,
    %c0_i32_8 = arith.constant 0 : i32
    %12 = arith.cmpi eq, %arg1, %c0_i32_8 : i32
    %13 = arith.extui %12 : i1 to i32
    %c0_i32_9 = arith.constant 0 : i32
    %14 = arith.cmpi ne, %13, %c0_i32_9 : i32
    scf.if %14 {
      %c0_10 = arith.constant 0 : index
      %c0_11 = arith.constant 0 : index
      %15 = vector.load %arg6[%c0_10, %c0_11] : memref<8x1xf32, #tpu.memory_space<vmem>>, vector<8x1xf32>
      %c0_12 = arith.constant 0 : index
      %c0_13 = arith.constant 0 : index
      %16 = memref.load %arg4[%c0_12, %c0_13] : memref<1x1xf32, #tpu.memory_space<smem>>
      %17 = vector.broadcast %16 : f32 to vector<8x1xf32>
      %18 = arith.addf %15, %17 : vector<8x1xf32>
      %19 = arith.negf %18 : vector<8x1xf32>
      %20 = math.exp %19 : vector<8x1xf32>
      %cst_14 = arith.constant 1.000000e+00 : f32
      %21 = vector.broadcast %cst_14 : f32 to vector<8x1xf32>
      %22 = arith.addf %21, %20 : vector<8x1xf32>
      %23 = arith.divf %21, %22 : vector<8x1xf32>
      %c0_15 = arith.constant 0 : index
      %c0_16 = arith.constant 0 : index
      %24 = vector.load %arg5[%c0_15, %c0_16] : memref<8x1xf32, #tpu.memory_space<vmem>>, vector<8x1xf32>
      tpu.vector_store %arg5[%c0_15, %c0_16], %23 {strides = array<i32>} : memref<8x1xf32, #tpu.memory_space<vmem>>, vector<8x1xf32>,
    } else {
    }
    return
  }
  func.func @transform_0(%arg0: i32, %arg1: i32) -> (i32, i32) {
    %c0_i32 = arith.constant 0 : i32
    return %arg0, %arg1 : i32, i32
  }
  func.func @transform_1(%arg0: i32, %arg1: i32) -> (i32, i32) {
    %c0_i32 = arith.constant 0 : i32
    %c0_i32_0 = arith.constant 0 : i32
    return %c0_i32, %arg1 : i32, i32
  }
  func.func @transform_2(%arg0: i32, %arg1: i32) -> (i32, i32) {
    %c0_i32 = arith.constant 0 : i32
    %c0_i32_0 = arith.constant 0 : i32
    %c0_i32_1 = arith.constant 0 : i32
    return %c0_i32, %c0_i32_0 : i32, i32
  }
  func.func @transform_3(%arg0: i32, %arg1: i32) -> (i32, i32) {
    %c0_i32 = arith.constant 0 : i32
    %c0_i32_0 = arith.constant 0 : i32
    return %arg0, %c0_i32 : i32, i32
  }
}

</mosaic_0001>

<llo_original>
// kernel: tpu_custom_call.1
$region0: #{tpu_custom_call.1}
  #allocation0 [shape = 'u32[]', space=smem, size = 0x4, offset = 0x4, fixed_abs, tag = 'smem constant byte address 0x4 - core index']
  #allocation1 [shape = 'u32[144,128]{1,0:T(1,128)}', space=vmem, size = 0x12000, scoped, tag = 'internal scratch']
  #allocation2 [shape = 'f32[8,1]{1,0:T(8,128)}', space=vmem, size = 0x1000, scoped, tag = 'scratch operand']
  #allocation3 [shape = 'f32[1,1]{1,0:T(1,128)S(6)}', space=smem, size = 0x200, scoped, tag = 'scoped memory for tpu_custom_call.1']
  %s0 = inlined_call_operand.hbm [shape: f32[8,128], index: 0, kind: input, shape index: {}]
  %s1 = inlined_call_operand.vmem [shape: f32[1,128], index: 1, kind: input, shape index: {}]
  %s2 = inlined_call_operand.<no memory space> [shape: f32[1,1], index: 2, kind: input, shape index: {}]
  %s3 = inlined_call_operand.vmem [shape: f32[8,1], index: 3, kind: output, shape index: {}]
  %s4 = sld [smem:[#allocation0]]
  $region34: #{tpu_custom_call.1} parent=0
    _
  %s6 = ssub.s32 1, %s4
  %s7 = scalar_select 0, %s6, %s4
  %8 = sst [smem:[#allocation3]] %s2
  $region1: #{tpu_custom_call.1} parent=0
    #allocation4 [shape = 'u8[4096]{0}', space=vmem, size = 0x1000, scoped, tag = 'input window, operand 0, single buffered']
    #allocation5 [shape = 's32[1]{0}', space=sflag, size = 0x4, scoped, tag = 'scoped memory for tpu_custom_call.1']
    %9 = vsyncpa [#allocation5], 0
    // Predicated region
    $region2: #{tpu_custom_call.1} parent=1 // pred_check
      _
    $region3: #{tpu_custom_call.1} parent=1 // pred_check_branch
      %11 = sbr.rel (0) target = $region5
    $region4: #{tpu_custom_call.1} parent=1 // pred_region
      %s13 = ssub.s32 128, 128
      %14 = vsyncadd [#allocation5], %s13
      %s16 = sshll.u32 [#allocation4], 4
      %s17 = int_to_ptr.vmem [resolvable:$true] %s16
      %19 = dma.hbm_to_vmem [thread:$0]  %s0, 128, %s17, [#allocation5]
    $region5: #{tpu_custom_call.1} parent=1 // pred_fallthru
      _
    // Predicated region
    $region6: #{tpu_custom_call.1} parent=1 // pred_check
      _
    $region7: #{tpu_custom_call.1} parent=1 // pred_check_branch
      %21 = sbr.rel (0) target = $region9
    $region8: #{tpu_custom_call.1} parent=1 // pred_region
      _
    $region9: #{tpu_custom_call.1} parent=1 // pred_fallthru
      _
    // Predicated region
    $region10: #{tpu_custom_call.1} parent=1 // pred_check
      _
    $region11: #{tpu_custom_call.1} parent=1 // pred_check_branch
      %23 = sbr.rel (0) target = $region13
    $region12: #{tpu_custom_call.1} parent=1 // pred_region
      _
    $region13: #{tpu_custom_call.1} parent=1 // pred_fallthru
      _
    // Predicated region
    $region14: #{tpu_custom_call.1} parent=1 // pred_check
      _
    $region15: #{tpu_custom_call.1} parent=1 // pred_check_branch
      %25 = sbr.rel (0) target = $region17
    $region16: #{tpu_custom_call.1} parent=1 // pred_region
      %26 = dma.done [#allocation5], 128
    $region17: #{tpu_custom_call.1} parent=1 // pred_fallthru
      _
    %p27 = scmp.eq.s32.totalorder 0, 0
    // Predicated region
    $region18: #{tpu_custom_call.1} parent=1 // pred_check
      %p28 = pneg %p27
    $region19: #{tpu_custom_call.1} parent=1 // pred_check_branch
      %30 = sbr.rel (%p28) target = $region21
    $region20: #{tpu_custom_call.1} parent=1 // pred_region
      %vm31 = vcmask 7168
      %32 = vst.msk [vmem:[#allocation2] sm:$0xff] %vm31, 0.0
    $region21: #{tpu_custom_call.1} parent=1 // pred_fallthru
      _
    %v33 = vld [vmem:[#allocation4] sm:$0xff]
    %v34 = vld [vmem:[%s1] sm:$0x1]
    %v36 = vlaneseq
    %v37 = vshrl.u32 %v36, 7
    %v38 = vsub.s32 0, %v37
    %v39 = vrot.slane %v34, %v38
    %v41 = vmul.f32 %v33, %v39
    %v42 = vld [vmem:[#allocation2] sm:$0xff]
    %43 = vadd.xlane.f32.xlu0 %v41
    %v44 = vpop.xlane.xlu0 %43
    %v45 = vadd.f32 %v42, %v44
    %vm46 = vcmask 7168
    %47 = vst.msk [vmem:[#allocation2] sm:$0xff] %vm46, %v45
    // Predicated region
    $region22: #{tpu_custom_call.1} parent=1 // pred_check
      %p48 = pneg %p27
    $region23: #{tpu_custom_call.1} parent=1 // pred_check_branch
      %50 = sbr.rel (%p48) target = $region25
    $region24: #{tpu_custom_call.1} parent=1 // pred_region
      %v51 = vld [vmem:[#allocation2] sm:$0xff]
      %s52 = sld [smem:[#allocation3]]
      %v53 = vstv %s52
      %v54 = vadd.f32 %v51, %v53
      %v55 = vxor.u32 %v54, 2147483648
      %v56 = vmul.f32 %v55, 1.442695
      %v57 = vpow.pop %v56
      %v58 = vadd.f32 %v57, 1.0
      %v59 = vrcp.pop %v58
      %v60 = vmul.f32 1.0, %v59
      %61 = vst.msk [vmem:[%s3] sm:$0xff] %vm46, %v60
    $region25: #{tpu_custom_call.1} parent=1 // pred_fallthru
      _
    // Predicated region
    $region26: #{tpu_custom_call.1} parent=1 // pred_check
      _
    $region27: #{tpu_custom_call.1} parent=1 // pred_check_branch
      %63 = sbr.rel (0) target = $region29
    $region28: #{tpu_custom_call.1} parent=1 // pred_region
      _
    $region29: #{tpu_custom_call.1} parent=1 // pred_fallthru
      _
    // Predicated region
    $region30: #{tpu_custom_call.1} parent=1 // pred_check
      _
    $region31: #{tpu_custom_call.1} parent=1 // pred_check_branch
      %65 = sbr.rel (0) target = $region33
    $region32: #{tpu_custom_call.1} parent=1 // pred_region
      _
    $region33: #{tpu_custom_call.1} parent=1 // pred_fallthru
      _
    %66 = vsyncpa [#allocation5], 1

</llo_original>
